<compile_context>
chip_gen: v7x
topology: tpu7x:2x2x1
jax: 0.10.0
libtpu: 0.0.40
codegen_flags: <defaults>
</compile_context>

<pallas_src>
import functools

import jax
import jax.numpy as jnp
from jax.experimental import pallas as pl
from jax.experimental.pallas import tpu as pltpu

_INV_SQRT2 = 0.7071067811865476


def _round_up(x, m):
    return ((x + m - 1) // m) * m


def _nbytes(shape, dtype):
    n = 1
    for s in shape:
        n *= int(s)
    return n * jnp.dtype(dtype).itemsize


# --------------------------------------------------------------------------------------
# Kernel
# --------------------------------------------------------------------------------------
def _timeblock_kernel(x_ref, w1_ref, b1_ref, shp_ref, shn_ref, wl_ref, bl_ref, o_ref):
    """One batch group per grid step; everything resident in VMEM.

    x_ref  : [D, L_in]       bf16 input block, lane = (batch-in-group)*S + s
    w1_ref : [7*Cp, D]       bf16 fused per-tap channel projections, row groups
                             [tc0, tg0 | tc1, tg1, skip | tc2, tg2] (Cp rows each)
    b1_ref : [7*Cp, 1]       f32 biases (non-zero only on the center group)
    shp_ref: [L_in, L_in]    f32 0/1 shift-right-by-one matrix (batch-boundary zeros)
    shn_ref: [L_in, L_in]    f32 0/1 shift-left-by-one matrix  (= shp^T)
    wl_ref : [L_in, L_out]   bf16 kron(I_G, restore_linear.weight^T)
    bl_ref : [1, L_out]      f32 restore bias tiled per group member
    o_ref  : [Cp, L_out]     f32 output block (lane = (batch-in-group)*S_out + o)
    """
    Cp = o_ref.shape[0]
    f32 = jnp.float32

    # Stage 1: all 7 per-tap channel projections in ONE MXU push (bias add is a tiny
    # lane-broadcast on the VPU, free under the MXU/DMA bottleneck).
    pre = jnp.dot(w1_ref[...], x_ref[...], preferred_element_type=f32) + b1_ref[...]

    # Temporal shifts of the tap-0 / tap-2 groups.  The shift matrices are 0/1 with the
    # per-batch boundary columns already zeroed, so no masks are needed and values pass
    # through exactly.  (See NOTE(synk) above re: pltpu.roll for 128-aligned blocks.)
    prev_g = jnp.dot(pre[: 2 * Cp], shp_ref[...], preferred_element_type=f32)
    next_g = jnp.dot(pre[5 * Cp :], shn_ref[...], preferred_element_type=f32)
    center = pre[2 * Cp : 5 * Cp]

    # All slices below are at multiples of Cp (a multiple of 8 sublanes) -> tile-aligned.
    time_conv = prev_g[:Cp] + center[:Cp] + next_g[:Cp]
    time_gate = prev_g[Cp:] + center[Cp : 2 * Cp] + next_g[Cp:]
    skip_conv = center[2 * Cp :]

    h = time_conv * jax.nn.sigmoid(time_gate) + skip_conv
    # Exact (erf) GELU, matching torch.nn.functional.gelu(approximate='none').
    g = 0.5 * h * (1.0 + jax.lax.erf(h * _INV_SQRT2))

    # Stage 2: restore_linear over time for the whole group, lane-dense output.
    y = jnp.dot(g.astype(wl_ref.dtype), wl_ref[...], preferred_element_type=f32)
    o_ref[...] = (y + bl_ref[...]).astype(o_ref.dtype)


# --------------------------------------------------------------------------------------
# One-time weight preparation (hoisted out of the per-call path)
# --------------------------------------------------------------------------------------
def _pick_batch_group(B, S, S_out):
    """Smallest batch group whose folded lane widths are 128-aligned; else whole batch."""
    for g in range(1, B):
        if B % g == 0 and (g * S) % 128 == 0 and (g * S_out) % 128 == 0:
            return g
    # TODO(synk): for batch sizes with no aligned divisor, pad B up to a multiple of an
    # aligned group instead of falling back to a single full-array block.
    return B


def prepare_timeblock(params, *, batch_group):
    """Build the fused, padded, bf16-cast operands once (not per forward call)."""
    wt, bt, wg, bg, ws, bs, wl, bl = params
    D, C = ws.shape
    S_out, S = wl.shape
    G = batch_group
    Cp = _round_up(C, 8)          # keep every row group sublane-aligned (f32 tile = 8 rows)
    L_in, L_out = G * S, G * S_out

    def padc(m):                  # [C, D] -> [Cp, D]
        return jnp.pad(m, ((0, Cp - C), (0, 0)))

    # Row groups ordered by tap: [prev | center (+skip) | next].
    w1 = jnp.concatenate(
        [padc(wt[0].T), padc(wg[0].T),                       # tap 0 (x[s-1])
         padc(wt[1].T), padc(wg[1].T), padc(ws.T),           # tap 1 (x[s])   + k=1 skip
         padc(wt[2].T), padc(wg[2].T)],                      # tap 2 (x[s+1])
        axis=0).astype(jnp.bfloat16)                         # [7*Cp, D]

    def padb(b):                  # [C] -> [Cp]
        return jnp.pad(b, (0, Cp - C))

    zeros2 = jnp.zeros((2 * Cp,), jnp.float32)
    b1 = jnp.concatenate([zeros2, padb(bt), padb(bg), padb(bs), zeros2]
                         ).reshape(7 * Cp, 1).astype(jnp.float32)

    # 0/1 shift matrices with per-batch boundary zeros baked in.
    lane = jnp.arange(L_in)
    sh_prev = ((lane[None, :] == lane[:, None] + 1)
               & (lane[None, :] % S != 0)).astype(jnp.float32)       # [L_in, L_in]
    sh_next = sh_prev.T

    # Bounded per-group block-diagonal restore weight (G == B only when B is tiny).
    wl_t = jnp.kron(jnp.eye(G, dtype=wl.dtype), wl.T).astype(jnp.bfloat16)  # [L_in, L_out]
    bl_rep = jnp.tile(bl, G).reshape(1, L_out).astype(jnp.float32)

    fused = (w1, b1, sh_prev, sh_next, wl_t, bl_rep)
    meta = (int(C), int(Cp), int(S), int(S_out), int(G))
    return fused, meta


# --------------------------------------------------------------------------------------
# Forward
# --------------------------------------------------------------------------------------
def timeblock_forward(x, fused, meta):
    """x: [B, S, D] float32.  Returns [B, S_out, C] (same as the torch module)."""
    w1, b1, sh_prev, sh_next, wl_t, bl_rep = fused
    C, Cp, S, S_out, G = meta
    B, S_x, D = x.shape
    assert S_x == S and B % G == 0
    num_groups = B // G
    L_in, L_out = G * S, G * S_out

    # Per-call prep is just layout plumbing: one transpose + bf16 cast of the activation.
    xt = jnp.transpose(x, (2, 0, 1)).reshape(D, B * S).astype(jnp.bfloat16)

    # Honest cost estimate (no kron flops, single-copy input bytes).
    flops = (2 * (7 * Cp) * D * (B * S)                                # stage-1 projections
             + num_groups * 2 * (2 * 2 * Cp) * L_in * L_in             # two shift dots / group
             + num_groups * 2 * Cp * L_in * L_out)                     # restore matmul
    bytes_accessed = (_nbytes((D, B * S), jnp.bfloat16)
                      + _nbytes((7 * Cp, D), jnp.bfloat16)
                      + _nbytes((7 * Cp, 1), jnp.float32)
                      + 2 * _nbytes((L_in, L_in), jnp.float32)
                      + _nbytes((L_in, L_out), jnp.bfloat16)
                      + _nbytes((1, L_out), jnp.float32)
                      + _nbytes((Cp, B * S_out), jnp.float32))
    cost = pl.CostEstimate(flops=flops, transcendentals=2 * Cp * B * S,
                           bytes_accessed=bytes_accessed)

    # Explicit VMEM budget (re-derived for v7x's 64 MiB physical / 32 MiB scoped default;
    # v5e/v6e have 128 MiB).  Budget = double-buffered blocks + resident operands + slack.
    need = (2 * _nbytes((D, L_in), jnp.bfloat16)
            + 2 * _nbytes((Cp, L_out), jnp.float32)
            + 2 * (_nbytes((7 * Cp, D), jnp.bfloat16) + _nbytes((7 * Cp, 1), jnp.float32)
                   + 2 * _nbytes((L_in, L_in), jnp.float32)
                   + _nbytes((L_in, L_out), jnp.bfloat16)
                   + _nbytes((1, L_out), jnp.float32)))
    vmem_limit = int(min(48 * 2**20, max(16 * 2**20, 4 * need)))

    out = pl.pallas_call(
        _timeblock_kernel,
        out_shape=jax.ShapeDtypeStruct((Cp, B * S_out), jnp.float32),
        grid=(num_groups,),
        in_specs=[
            pl.BlockSpec((D, L_in), lambda i: (0, i)),          # x^T block (pipelined)
            pl.BlockSpec((7 * Cp, D), lambda i: (0, 0)),        # fused conv weights (resident)
            pl.BlockSpec((7 * Cp, 1), lambda i: (0, 0)),        # fused conv biases (resident)
            pl.BlockSpec((L_in, L_in), lambda i: (0, 0)),       # shift-prev matrix (resident)
            pl.BlockSpec((L_in, L_in), lambda i: (0, 0)),       # shift-next matrix (resident)
            pl.BlockSpec((L_in, L_out), lambda i: (0, 0)),      # kron(I_G, wl^T)   (resident)
            pl.BlockSpec((1, L_out), lambda i: (0, 0)),         # restore bias      (resident)
        ],
        out_specs=pl.BlockSpec((Cp, L_out), lambda i: (0, i)),  # lane-dense output block
        compiler_params=pltpu.CompilerParams(
            # On v7x the group axis could be pltpu.CORE_PARALLEL to split across both TCs.
            dimension_semantics=("parallel",),
            vmem_limit_bytes=vmem_limit,
        ),
        cost_estimate=cost,
    )(xt, w1, b1, sh_prev, sh_next, wl_t, bl_rep)

    # [Cp, B*S_out] -> [B, S_out, C]  (drop channel padding, cheap XLA layout fixup).
    return jnp.transpose(out[:C].reshape(C, B, S_out), (1, 2, 0))


# --------------------------------------------------------------------------------------
# Params / reference (pure JAX) for verification
# --------------------------------------------------------------------------------------
def init_params(key, in_channel, out_channel, in_dim, out_dim):
    ks = jax.random.split(key, 8)
    scale = 0.2
    wt = scale * jax.random.normal(ks[0], (3, in_channel, out_channel), jnp.float32)
    bt = scale * jax.random.normal(ks[1], (out_channel,), jnp.float32)
    wg = scale * jax.random.normal(ks[2], (3, in_channel, out_channel), jnp.float32)
    bg = scale * jax.random.normal(ks[3], (out_channel,), jnp.float32)
    ws = scale * jax.random.normal(ks[4], (in_channel, out_channel), jnp.float32)
    bs = scale * jax.random.normal(ks[5], (out_channel,), jnp.float32)
    wl = scale * jax.random.normal(ks[6], (out_dim, in_dim), jnp.float32)
    bl = scale * jax.random.normal(ks[7], (out_dim,), jnp.float32)
    return (wt, bt, wg, bg, ws, bs, wl, bl)


def reference_forward(x, params):
    """Pure-JAX f32 reference of the PyTorch TimeBlock.forward."""
    wt, bt, wg, bg, ws, bs, wl, bl = params
    xp = jnp.pad(x, ((0, 0), (1, 1), (0, 0)))  # pad seq axis by 1 on each side

    def conv3(w, b):
        return (jnp.einsum('bsd,dc->bsc', xp[:, :-2], w[0])
                + jnp.einsum('bsd,dc->bsc', xp[:, 1:-1], w[1])
                + jnp.einsum('bsd,dc->bsc', xp[:, 2:], w[2]) + b[None, None, :])

    tc = conv3(wt, bt)
    tg = jax.nn.sigmoid(conv3(wg, bg))
    sc = jnp.einsum('bsd,dc->bsc', x, ws) + bs[None, None, :]
    h = jax.nn.gelu(tc * tg + sc, approximate=False)
    y = jnp.einsum('os,bsc->boc', wl, h) + bl[None, :, None]
    return y


if __name__ == "__main__":
    # Shapes implied by the module: in_channel = feature dim D, in_dim = seq length S.
    B, in_dim, in_channel = 2, 16, 8
    out_channel, out_dim = 8, 24

    key = jax.random.PRNGKey(0)
    kx, kp = jax.random.split(key)
    x = jax.random.normal(kx, (B, in_dim, in_channel), jnp.float32)  # [B, S, D]
    params = init_params(kp, in_channel, out_channel, in_dim, out_dim)

    # One-time fused-weight preparation (hoisted out of the per-call path).
    G = _pick_batch_group(B, in_dim, out_dim)      # B=2 is tiny -> single full-array block
    fused, meta = prepare_timeblock(params, batch_group=G)
    fwd = jax.jit(lambda xx: timeblock_forward(xx, fused, meta))

    out = jax.block_until_ready(fwd(x))

    ref = reference_forward(x, params)
    assert out.shape == (B, out_dim, out_channel), out.shape
    # bf16 matmul operands (f32 accumulation) -> tolerance loosened vs the all-f32 version.
    max_err = jnp.max(jnp.abs(out - ref))
    assert jnp.allclose(out, ref, atol=8e-2, rtol=8e-2), f"max abs err {max_err}"

    print("KERNEL_OK")
</pallas_src>

<mosaic_0001>
module attributes {stable_mosaic.version = 11 : i64} {
  func.func @_timeblock_kernel(%arg0: i32, %arg1: memref<8x32xbf16, #tpu.memory_space<vmem>>, %arg2: memref<56x8xbf16, #tpu.memory_space<vmem>>, %arg3: memref<56x1xf32, #tpu.memory_space<vmem>>, %arg4: memref<32x32xf32, #tpu.memory_space<vmem>>, %arg5: memref<32x32xf32, #tpu.memory_space<vmem>>, %arg6: memref<32x48xbf16, #tpu.memory_space<vmem>>, %arg7: memref<1x48xf32, #tpu.memory_space<vmem>>, %arg8: memref<8x48xf32, #tpu.memory_space<vmem>>) attributes {dimension_semantics = [#tpu.dimension_semantics<parallel>], iteration_bounds = array<i64: 1>, scalar_prefetch = 0 : i64, scratch_operands = 0 : i64, tpu.core_type = #tpu.core_type<tc>, window_params = [{transform_indices = @transform_0, window_bounds = array<i64: 8, 32>}, {pipeline_mode = #tpu.pipeline_mode<synchronous>, transform_indices = @transform_1, window_bounds = array<i64: 56, 8>}, {pipeline_mode = #tpu.pipeline_mode<synchronous>, transform_indices = @transform_2, window_bounds = array<i64: 56, 1>}, {pipeline_mode = #tpu.pipeline_mode<synchronous>, transform_indices = @transform_3, window_bounds = array<i64: 32, 32>}, {pipeline_mode = #tpu.pipeline_mode<synchronous>, transform_indices = @transform_4, window_bounds = array<i64: 32, 32>}, {pipeline_mode = #tpu.pipeline_mode<synchronous>, transform_indices = @transform_5, window_bounds = array<i64: 32, 48>}, {pipeline_mode = #tpu.pipeline_mode<synchronous>, transform_indices = @transform_6, window_bounds = array<i64: 1, 48>}, {transform_indices = @transform_7, window_bounds = array<i64: 8, 48>}]} {
    %c0 = arith.constant 0 : index
    %c0_0 = arith.constant 0 : index
    %0 = vector.load %arg2[%c0, %c0_0] : memref<56x8xbf16, #tpu.memory_space<vmem>>, vector<56x8xbf16>
    %c0_1 = arith.constant 0 : index
    %c0_2 = arith.constant 0 : index
    %1 = vector.load %arg1[%c0_1, %c0_2] : memref<8x32xbf16, #tpu.memory_space<vmem>>, vector<8x32xbf16>
    %cst = arith.constant dense<0.000000e+00> : vector<56x32xf32>
    %2 = tpu.matmul %0, %1, %cst {dimension_numbers = #tpu.dot_dimension_numbers<[1], [0], [0], [1], [0, 0, 1, 1], [], []>} : vector<56x8xbf16>, vector<8x32xbf16>, vector<56x32xf32> -> vector<56x32xf32>
    %c0_3 = arith.constant 0 : index
    %c0_4 = arith.constant 0 : index
    %3 = vector.load %arg3[%c0_3, %c0_4] : memref<56x1xf32, #tpu.memory_space<vmem>>, vector<56x1xf32>
    %4 = vector.broadcast %3 : vector<56x1xf32> to vector<56x32xf32>
    %5 = arith.addf %2, %4 : vector<56x32xf32>
    %6 = vector.extract_strided_slice %5 {offsets = [0, 0], sizes = [16, 32], strides = [1, 1]} : vector<56x32xf32> to vector<16x32xf32>
    %c0_5 = arith.constant 0 : index
    %c0_6 = arith.constant 0 : index
    %7 = vector.load %arg4[%c0_5, %c0_6] : memref<32x32xf32, #tpu.memory_space<vmem>>, vector<32x32xf32>
    %cst_7 = arith.constant dense<0.000000e+00> : vector<16x32xf32>
    %8 = tpu.matmul %6, %7, %cst_7 {dimension_numbers = #tpu.dot_dimension_numbers<[1], [0], [0], [1], [0, 0, 1, 1], [], []>} : vector<16x32xf32>, vector<32x32xf32>, vector<16x32xf32> -> vector<16x32xf32>
    %9 = vector.extract_strided_slice %5 {offsets = [40, 0], sizes = [16, 32], strides = [1, 1]} : vector<56x32xf32> to vector<16x32xf32>
    %c0_8 = arith.constant 0 : index
    %c0_9 = arith.constant 0 : index
    %10 = vector.load %arg5[%c0_8, %c0_9] : memref<32x32xf32, #tpu.memory_space<vmem>>, vector<32x32xf32>
    %cst_10 = arith.constant dense<0.000000e+00> : vector<16x32xf32>
    %11 = tpu.matmul %9, %10, %cst_10 {dimension_numbers = #tpu.dot_dimension_numbers<[1], [0], [0], [1], [0, 0, 1, 1], [], []>} : vector<16x32xf32>, vector<32x32xf32>, vector<16x32xf32> -> vector<16x32xf32>
    %12 = vector.extract_strided_slice %5 {offsets = [16, 0], sizes = [24, 32], strides = [1, 1]} : vector<56x32xf32> to vector<24x32xf32>
    %13 = vector.extract_strided_slice %8 {offsets = [0, 0], sizes = [8, 32], strides = [1, 1]} : vector<16x32xf32> to vector<8x32xf32>
    %14 = vector.extract_strided_slice %12 {offsets = [0, 0], sizes = [8, 32], strides = [1, 1]} : vector<24x32xf32> to vector<8x32xf32>
    %15 = arith.addf %13, %14 : vector<8x32xf32>
    %16 = vector.extract_strided_slice %11 {offsets = [0, 0], sizes = [8, 32], strides = [1, 1]} : vector<16x32xf32> to vector<8x32xf32>
    %17 = arith.addf %15, %16 : vector<8x32xf32>
    %18 = vector.extract_strided_slice %8 {offsets = [8, 0], sizes = [8, 32], strides = [1, 1]} : vector<16x32xf32> to vector<8x32xf32>
    %19 = vector.extract_strided_slice %12 {offsets = [8, 0], sizes = [8, 32], strides = [1, 1]} : vector<24x32xf32> to vector<8x32xf32>
    %20 = arith.addf %18, %19 : vector<8x32xf32>
    %21 = vector.extract_strided_slice %11 {offsets = [8, 0], sizes = [8, 32], strides = [1, 1]} : vector<16x32xf32> to vector<8x32xf32>
    %22 = arith.addf %20, %21 : vector<8x32xf32>
    %23 = vector.extract_strided_slice %12 {offsets = [16, 0], sizes = [8, 32], strides = [1, 1]} : vector<24x32xf32> to vector<8x32xf32>
    %24 = arith.negf %22 : vector<8x32xf32>
    %25 = math.exp %24 : vector<8x32xf32>
    %cst_11 = arith.constant 1.000000e+00 : f32
    %26 = vector.broadcast %cst_11 : f32 to vector<8x32xf32>
    %27 = arith.addf %26, %25 : vector<8x32xf32>
    %28 = arith.divf %26, %27 : vector<8x32xf32>
    %29 = arith.mulf %17, %28 : vector<8x32xf32>
    %30 = arith.addf %29, %23 : vector<8x32xf32>
    %cst_12 = arith.constant 5.000000e-01 : f32
    %31 = vector.broadcast %cst_12 : f32 to vector<8x32xf32>
    %32 = arith.mulf %31, %30 : vector<8x32xf32>
    %cst_13 = arith.constant 0.707106769 : f32
    %33 = vector.broadcast %cst_13 : f32 to vector<8x32xf32>
    %34 = arith.mulf %30, %33 : vector<8x32xf32>
    %35 = math.erf %34 : vector<8x32xf32>
    %cst_14 = arith.constant 1.000000e+00 : f32
    %36 = vector.broadcast %cst_14 : f32 to vector<8x32xf32>
    %37 = arith.addf %36, %35 : vector<8x32xf32>
    %38 = arith.mulf %32, %37 : vector<8x32xf32>
    %39 = arith.truncf %38 : vector<8x32xf32> to vector<8x32xbf16>
    %c0_15 = arith.constant 0 : index
    %c0_16 = arith.constant 0 : index
    %40 = vector.load %arg6[%c0_15, %c0_16] : memref<32x48xbf16, #tpu.memory_space<vmem>>, vector<32x48xbf16>
    %cst_17 = arith.constant dense<0.000000e+00> : vector<8x48xf32>
    %41 = tpu.matmul %39, %40, %cst_17 {dimension_numbers = #tpu.dot_dimension_numbers<[1], [0], [0], [1], [0, 0, 1, 1], [], []>} : vector<8x32xbf16>, vector<32x48xbf16>, vector<8x48xf32> -> vector<8x48xf32>
    %c0_18 = arith.constant 0 : index
    %c0_19 = arith.constant 0 : index
    %42 = vector.load %arg7[%c0_18, %c0_19] : memref<1x48xf32, #tpu.memory_space<vmem>>, vector<1x48xf32>
    %43 = vector.broadcast %42 : vector<1x48xf32> to vector<8x48xf32>
    %44 = arith.addf %41, %43 : vector<8x48xf32>
    %c0_20 = arith.constant 0 : index
    %c0_21 = arith.constant 0 : index
    %45 = vector.load %arg8[%c0_20, %c0_21] : memref<8x48xf32, #tpu.memory_space<vmem>>, vector<8x48xf32>
    tpu.vector_store %arg8[%c0_20, %c0_21], %44 {strides = array<i32>} : memref<8x48xf32, #tpu.memory_space<vmem>>, vector<8x48xf32>,
    return
  }
  func.func @transform_0(%arg0: i32) -> (i32, i32) {
    %c0_i32 = arith.constant 0 : i32
    %c0_i32_0 = arith.constant 0 : i32
    return %c0_i32, %arg0 : i32, i32
  }
  func.func @transform_1(%arg0: i32) -> (i32, i32) {
    %c0_i32 = arith.constant 0 : i32
    %c0_i32_0 = arith.constant 0 : i32
    %c0_i32_1 = arith.constant 0 : i32
    return %c0_i32, %c0_i32_0 : i32, i32
  }
  func.func @transform_2(%arg0: i32) -> (i32, i32) {
    %c0_i32 = arith.constant 0 : i32
    %c0_i32_0 = arith.constant 0 : i32
    %c0_i32_1 = arith.constant 0 : i32
    return %c0_i32, %c0_i32_0 : i32, i32
  }
  func.func @transform_3(%arg0: i32) -> (i32, i32) {
    %c0_i32 = arith.constant 0 : i32
    %c0_i32_0 = arith.constant 0 : i32
    %c0_i32_1 = arith.constant 0 : i32
    return %c0_i32, %c0_i32_0 : i32, i32
  }
  func.func @transform_4(%arg0: i32) -> (i32, i32) {
    %c0_i32 = arith.constant 0 : i32
    %c0_i32_0 = arith.constant 0 : i32
    %c0_i32_1 = arith.constant 0 : i32
    return %c0_i32, %c0_i32_0 : i32, i32
  }
  func.func @transform_5(%arg0: i32) -> (i32, i32) {
    %c0_i32 = arith.constant 0 : i32
    %c0_i32_0 = arith.constant 0 : i32
    %c0_i32_1 = arith.constant 0 : i32
    return %c0_i32, %c0_i32_0 : i32, i32
  }
  func.func @transform_6(%arg0: i32) -> (i32, i32) {
    %c0_i32 = arith.constant 0 : i32
    %c0_i32_0 = arith.constant 0 : i32
    %c0_i32_1 = arith.constant 0 : i32
    return %c0_i32, %c0_i32_0 : i32, i32
  }
  func.func @transform_7(%arg0: i32) -> (i32, i32) {
    %c0_i32 = arith.constant 0 : i32
    %c0_i32_0 = arith.constant 0 : i32
    return %c0_i32, %arg0 : i32, i32
  }
}

</mosaic_0001>

<llo_original>
// kernel: _lambda_.1
$region0: #{_lambda_.1}
  #allocation0 [shape = 'u32[]', space=smem, size = 0x4, offset = 0x4, fixed_abs, tag = 'smem constant byte address 0x4 - core index']
  #allocation1 [shape = 'u32[144,128]{1,0:T(1,128)}', space=vmem, size = 0x12000, scoped, tag = 'internal scratch']
  %s0 = inlined_call_operand.vmem [shape: bf16[8,32], index: 0, kind: input, shape index: {}]
  %s1 = inlined_call_operand.hbm [shape: bf16[56,8], index: 1, kind: input, shape index: {}]
  %s2 = inlined_call_operand.vmem [shape: f32[56,1], index: 2, kind: input, shape index: {}]
  %s3 = inlined_call_operand.hbm [shape: f32[32,32], index: 3, kind: input, shape index: {}]
  %s4 = inlined_call_operand.hbm [shape: f32[32,32], index: 4, kind: input, shape index: {}]
  %s5 = inlined_call_operand.vmem [shape: bf16[32,48], index: 5, kind: input, shape index: {}]
  %s6 = inlined_call_operand.vmem [shape: f32[1,48], index: 6, kind: input, shape index: {}]
  %s7 = inlined_call_operand.vmem [shape: f32[8,48], index: 7, kind: output, shape index: {}]
  %s8 = sld [smem:[#allocation0]]
  $region50: #{_lambda_.1} parent=0
    _
  %s10 = ssub.s32 1, %s8
  %s11 = scalar_select 0, %s10, %s8
  $region1: #{_lambda_.1} parent=0
    #allocation2 [shape = 'u8[14336]{0}', space=vmem, size = 0x3800, scoped, tag = 'input window, operand 1, single buffered']
    #allocation3 [shape = 's32[1]{0}', space=sflag, size = 0x4, scoped, tag = 'scoped memory for _lambda_.1']
    #allocation4 [shape = 'u8[16384]{0}', space=vmem, size = 0x4000, scoped, tag = 'input window, operand 3, single buffered']
    #allocation5 [shape = 's32[1]{0}', space=sflag, size = 0x4, scoped, tag = 'scoped memory for _lambda_.1']
    #allocation6 [shape = 'u8[16384]{0}', space=vmem, size = 0x4000, scoped, tag = 'input window, operand 4, single buffered']
    %12 = vsyncpa [#allocation3], 0
    %13 = vsyncpa [#allocation5], 0
    // Predicated region
    $region2: #{_lambda_.1} parent=1 // pred_check
      _
    $region3: #{_lambda_.1} parent=1 // pred_check_branch
      %15 = sbr.rel (0) target = $region5
    $region4: #{_lambda_.1} parent=1 // pred_region
      _
    $region5: #{_lambda_.1} parent=1 // pred_fallthru
      _
    // Predicated region
    $region6: #{_lambda_.1} parent=1 // pred_check
      _
    $region7: #{_lambda_.1} parent=1 // pred_check_branch
      %17 = sbr.rel (0) target = $region9
    $region8: #{_lambda_.1} parent=1 // pred_region
      %s19 = ssub.s32 448, 448
      %20 = vsyncadd [#allocation3], %s19
      %s21 = sshll.u32 [#allocation2], 4
      %s22 = int_to_ptr.vmem [resolvable:$true] %s21
      %27 = dma.hbm_to_vmem [thread:$0]  %s1, 448, %s22, [#allocation3], 64, 64, 4
    $region9: #{_lambda_.1} parent=1 // pred_fallthru
      _
    // Predicated region
    $region10: #{_lambda_.1} parent=1 // pred_check
      _
    $region11: #{_lambda_.1} parent=1 // pred_check_branch
      %29 = sbr.rel (0) target = $region13
    $region12: #{_lambda_.1} parent=1 // pred_region
      _
    $region13: #{_lambda_.1} parent=1 // pred_fallthru
      _
    // Predicated region
    $region14: #{_lambda_.1} parent=1 // pred_check
      _
    $region15: #{_lambda_.1} parent=1 // pred_check_branch
      %31 = sbr.rel (0) target = $region17
    $region16: #{_lambda_.1} parent=1 // pred_region
      %s33 = ssub.s32 512, 512
      %34 = vsyncadd [#allocation5], %s33
      %s35 = sshll.u32 [#allocation4], 4
      %s36 = int_to_ptr.vmem [resolvable:$true] %s35
      %41 = dma.hbm_to_vmem [thread:$0]  %s3, 512, %s36, [#allocation5], 128, 128, 8
    $region17: #{_lambda_.1} parent=1 // pred_fallthru
      _
    // Predicated region
    $region18: #{_lambda_.1} parent=1 // pred_check
      _
    $region19: #{_lambda_.1} parent=1 // pred_check_branch
      %43 = sbr.rel (0) target = $region21
    $region20: #{_lambda_.1} parent=1 // pred_region
      %s45 = ssub.s32 512, 512
      %46 = vsyncadd [#allocation5], %s45
      %s47 = sshll.u32 [#allocation6], 4
      %s48 = int_to_ptr.vmem [resolvable:$true] %s47
      %53 = dma.hbm_to_vmem [thread:$0]  %s4, 512, %s48, [#allocation5], 128, 128, 8
    $region21: #{_lambda_.1} parent=1 // pred_fallthru
      _
    // Predicated region
    $region22: #{_lambda_.1} parent=1 // pred_check
      _
    $region23: #{_lambda_.1} parent=1 // pred_check_branch
      %55 = sbr.rel (0) target = $region25
    $region24: #{_lambda_.1} parent=1 // pred_region
      _
    $region25: #{_lambda_.1} parent=1 // pred_fallthru
      _
    // Predicated region
    $region26: #{_lambda_.1} parent=1 // pred_check
      _
    $region27: #{_lambda_.1} parent=1 // pred_check_branch
      %57 = sbr.rel (0) target = $region29
    $region28: #{_lambda_.1} parent=1 // pred_region
      _
    $region29: #{_lambda_.1} parent=1 // pred_fallthru
      _
    // Predicated region
    $region30: #{_lambda_.1} parent=1 // pred_check
      _
    $region31: #{_lambda_.1} parent=1 // pred_check_branch
      %59 = sbr.rel (0) target = $region33
    $region32: #{_lambda_.1} parent=1 // pred_region
      %60 = dma.done [#allocation3], 448
    $region33: #{_lambda_.1} parent=1 // pred_fallthru
      _
    // Predicated region
    $region34: #{_lambda_.1} parent=1 // pred_check
      _
    $region35: #{_lambda_.1} parent=1 // pred_check_branch
      %62 = sbr.rel (0) target = $region37
    $region36: #{_lambda_.1} parent=1 // pred_region
      %63 = dma.done [#allocation5], 512
    $region37: #{_lambda_.1} parent=1 // pred_fallthru
      _
    // Predicated region
    $region38: #{_lambda_.1} parent=1 // pred_check
      _
    $region39: #{_lambda_.1} parent=1 // pred_check_branch
      %65 = sbr.rel (0) target = $region41
    $region40: #{_lambda_.1} parent=1 // pred_region
      %66 = dma.done [#allocation5], 512
    $region41: #{_lambda_.1} parent=1 // pred_fallthru
      _
    %v68 = vld [vmem:[#allocation2] sm:$0xf]
    %v69 = vld [vmem:[#allocation2 + $0x4] sm:$0xf]
    %v70 = vld [vmem:[#allocation2 + $0x8] sm:$0xf]
    %v71 = vld [vmem:[#allocation2 + $0xc] sm:$0xf]
    %v72 = vld [vmem:[#allocation2 + $0x10] sm:$0xf]
    %v73 = vld [vmem:[#allocation2 + $0x14] sm:$0xf]
    %v74 = vld [vmem:[#allocation2 + $0x18] sm:$0xf]
    %v75 = vld [vmem:[%s0] sm:$0xf]
    %v76 = vld [vmem:[%s2] sm:$0xff]
    %v77 = vld [vmem:[%s2 + $0x8] sm:$0xff]
    %v78 = vld [vmem:[%s2 + $0x10] sm:$0xff]
    %v79 = vld [vmem:[%s2 + $0x18] sm:$0xff]
    %v80 = vld [vmem:[%s2 + $0x20] sm:$0xff]
    %v81 = vld [vmem:[%s2 + $0x28] sm:$0xff]
    %v82 = vld [vmem:[%s2 + $0x30] sm:$0xff]
    %84 = vset.pattern.permute.xlu0 0
    %85 = vperm.xlu0 %84, %v76
    %v86 = vpop.permute.xlu0 %85
    %89 = vset.pattern.permute.xlu0 0
    %90 = vperm.xlu0 %89, %v77
    %v91 = vpop.permute.xlu0 %90
    %94 = vset.pattern.permute.xlu0 0
    %95 = vperm.xlu0 %94, %v78
    %v96 = vpop.permute.xlu0 %95
    %99 = vset.pattern.permute.xlu0 0
    %100 = vperm.xlu0 %99, %v79
    %v101 = vpop.permute.xlu0 %100
    %104 = vset.pattern.permute.xlu0 0
    %105 = vperm.xlu0 %104, %v80
    %v106 = vpop.permute.xlu0 %105
    %109 = vset.pattern.permute.xlu0 0
    %110 = vperm.xlu0 %109, %v81
    %v111 = vpop.permute.xlu0 %110
    %114 = vset.pattern.permute.xlu0 0
    %115 = vperm.xlu0 %114, %v82
    %v116 = vpop.permute.xlu0 %115
    %v125 = vunpack.c.l.b16 %v68
    %v126 = vunpack.c.l.b16 %v69
    %v127 = vunpack.c.l.b16 %v70
    %v128 = vunpack.c.l.b16 %v71
    %v129 = vunpack.c.l.b16 %v72
    %v130 = vunpack.c.l.b16 %v73
    %v131 = vunpack.c.l.b16 %v74
    %v132 = vpack.c.b16 %v126, %v125
    %v133 = vpack.c.b16 %v128, %v127
    %v134 = vpack.c.b16 %v130, %v129
    %v135 = vpack.c.b16 %v131, %v131
    %vm136 = vcmask 64512
    %v138 = vsel %vm136, %v132, 0
    %v141 = vsel %vm136, %v133, 0
    %v144 = vsel %vm136, %v134, 0
    %v147 = vsel %vm136, %v135, 0
    %vm149 = vcmask 1043456
    %v151 = vsel %vm149, %v75, 0
    %153 = vmatprep.subr.bf16.mxu0 0
    %154 = vmatpush1.bf16.msra.mxu0 %v151
    %155 = vmatprep.subr.bf16.mxu0 0
    %156 = vmatpush1.bf16.msra.mxu0 0
    %157 = vmatprep.subr.bf16.mxu0 0
    %158 = vmatpush1.bf16.msra.mxu0 0
    %159 = vmatprep.subr.bf16.mxu0 0
    %160 = vmatpush1.bf16.msra.mxu0 0
    %161 = vmatprep.subr.bf16.mxu0 0
    %162 = vmatpush1.bf16.msra.mxu0 0
    %163 = vmatprep.subr.bf16.mxu0 0
    %164 = vmatpush1.bf16.msra.mxu0 0
    %165 = vmatprep.subr.bf16.mxu0 0
    %166 = vmatpush1.bf16.msra.mxu0 0
    %167 = vmatprep.subr.bf16.mxu0 0
    %168 = vmatpush1.bf16.msra.mxu0 0
    %169 = vmatprep.subr.bf16.mxu0 0
    %170 = vmatpush1.bf16.msra.mxu0 0
    %171 = vmatprep.subr.bf16.mxu0 0
    %172 = vmatpush1.bf16.msra.mxu0 0
    %173 = vmatprep.subr.bf16.mxu0 0
    %174 = vmatpush1.bf16.msra.mxu0 0
    %175 = vmatprep.subr.bf16.mxu0 0
    %176 = vmatpush1.bf16.msra.mxu0 0
    %177 = vmatprep.subr.bf16.mxu0 0
    %178 = vmatpush1.bf16.msra.mxu0 0
    %179 = vmatprep.subr.bf16.mxu0 0
    %180 = vmatpush1.bf16.msra.mxu0 0
    %181 = vmatprep.subr.bf16.mxu0 0
    %182 = vmatpush1.bf16.msra.mxu0 0
    %183 = vmatprep.subr.bf16.mxu0 0
    %184 = vmatpush1.bf16.msra.mxu0 0
    %185 = vmatprep.mubr.bf16.mxu0 0
    %186 = vmatmul.mubr.bf16.gmra.mrb[0].mxu0 %v138
    %v187 = vpop.f32.mrb[0].mxu0
    %v188 = vadd.f32 %v86, %v187
    %v189 = vpop.f32.mrb[0].mxu0
    %v190 = vpop.f32.mrb[0].mxu0
    %v191 = vadd.f32 %v91, %v190
    %v192 = vpop.f32.mrb[0].mxu0
    %193 = vmatprep.mubr.bf16.mxu0 0
    %194 = vmatmul.mubr.bf16.gmra.mrb[0].mxu0 %v141
    %v195 = vpop.f32.mrb[0].mxu0
    %v196 = vadd.f32 %v96, %v195
    %v197 = vpop.f32.mrb[0].mxu0
    %v198 = vpop.f32.mrb[0].mxu0
    %v199 = vadd.f32 %v101, %v198
    %v200 = vpop.f32.mrb[0].mxu0
    %201 = vmatprep.mubr.bf16.mxu0 0
    %202 = vmatmul.mubr.bf16.gmra.mrb[0].mxu0 %v144
    %v203 = vpop.f32.mrb[0].mxu0
    %v204 = vadd.f32 %v106, %v203
    %v205 = vpop.f32.mrb[0].mxu0
    %v206 = vpop.f32.mrb[0].mxu0
    %v207 = vadd.f32 %v111, %v206
    %v208 = vpop.f32.mrb[0].mxu0
    %209 = vmatprep.mubr.bf16.mxu0 0
    %210 = vmatmul.mubr.bf16.gmra.mrb[0].mxu0 %v147
    %v211 = vpop.f32.mrb[0].mxu0
    %v212 = vadd.f32 %v116, %v211
    %v213 = vpop.f32.mrb[0].mxu0
    %v214 = vpop.f32.mrb[0].mxu0
    %v215 = vpop.f32.mrb[0].mxu0
    %216 = vdwg.mxu0
    %v217 = vld [vmem:[#allocation4] sm:$0xff]
    %v218 = vld [vmem:[#allocation4 + $0x8] sm:$0xff]
    %v219 = vld [vmem:[#allocation4 + $0x10] sm:$0xff]
    %v220 = vld [vmem:[#allocation4 + $0x18] sm:$0xff]
    %vm221 = vcmask 261120
    %v223 = vsel %vm221, %v188, 0
    %v226 = vsel %vm221, %v191, 0
    %228 = vmatprep.subr.mxu0 0.0
    %229 = vmatpush1.msra.mxu0 %v217
    %230 = vmatprep.subr.mxu0 0.0
    %231 = vmatpush1.msra.mxu0 %v218
    %232 = vmatprep.subr.mxu0 0.0
    %233 = vmatpush1.msra.mxu0 %v219
    %234 = vmatprep.subr.mxu0 0.0
    %235 = vmatpush1.msra.mxu0 %v220
    %236 = vmatprep.subr.mxu0 0.0
    %237 = vmatpush1.msra.mxu0 0.0
    %238 = vmatprep.subr.mxu0 0.0
    %239 = vmatpush1.msra.mxu0 0.0
    %240 = vmatprep.subr.mxu0 0.0
    %241 = vmatpush1.msra.mxu0 0.0
    %242 = vmatprep.subr.mxu0 0.0
    %243 = vmatpush1.msra.mxu0 0.0
    %244 = vmatprep.subr.mxu0 0.0
    %245 = vmatpush1.msra.mxu0 0.0
    %246 = vmatprep.subr.mxu0 0.0
    %247 = vmatpush1.msra.mxu0 0.0
    %248 = vmatprep.subr.mxu0 0.0
    %249 = vmatpush1.msra.mxu0 0.0
    %250 = vmatprep.subr.mxu0 0.0
    %251 = vmatpush1.msra.mxu0 0.0
    %252 = vmatprep.subr.mxu0 0.0
    %253 = vmatpush1.msra.mxu0 0.0
    %254 = vmatprep.subr.mxu0 0.0
    %255 = vmatpush1.msra.mxu0 0.0
    %256 = vmatprep.subr.mxu0 0.0
    %257 = vmatpush1.msra.mxu0 0.0
    %258 = vmatprep.subr.mxu0 0.0
    %259 = vmatpush1.msra.mxu0 0.0
    %260 = vmatprep.subr.mxu0 0.0
    %261 = vmatpush1.msra.mxu0 0.0
    %262 = vmatprep.subr.mxu0 0.0
    %263 = vmatpush1.msra.mxu0 0.0
    %264 = vmatprep.subr.mxu0 0.0
    %265 = vmatpush1.msra.mxu0 0.0
    %266 = vmatprep.subr.mxu0 0.0
    %267 = vmatpush1.msra.mxu0 0.0
    %268 = vmatprep.subr.mxu0 0.0
    %269 = vmatpush1.msra.mxu0 0.0
    %270 = vmatprep.subr.mxu0 0.0
    %271 = vmatpush1.msra.mxu0 0.0
    %272 = vmatprep.subr.mxu0 0.0
    %273 = vmatpush1.msra.mxu0 0.0
    %274 = vmatprep.subr.mxu0 0.0
    %275 = vmatpush1.msra.mxu0 0.0
    %276 = vmatprep.subr.mxu0 0.0
    %277 = vmatpush1.msra.mxu0 0.0
    %278 = vmatprep.subr.mxu0 0.0
    %279 = vmatpush1.msra.mxu0 0.0
    %280 = vmatprep.subr.mxu0 0.0
    %281 = vmatpush1.msra.mxu0 0.0
    %282 = vmatprep.subr.mxu0 0.0
    %283 = vmatpush1.msra.mxu0 0.0
    %284 = vmatprep.subr.mxu0 0.0
    %285 = vmatpush1.msra.mxu0 0.0
    %286 = vmatprep.subr.mxu0 0.0
    %287 = vmatpush1.msra.mxu0 0.0
    %288 = vmatprep.subr.mxu0 0.0
    %289 = vmatpush1.msra.mxu0 0.0
    %290 = vmatprep.subr.mxu0 0.0
    %291 = vmatpush1.msra.mxu0 0.0
    %292 = vmatprep.mubr.f32.mxu0 0.0
    %293 = vmatmul.mubr.f32.gmra.mrb[0].mxu0 %v223
    %v294 = vpop.f32.mrb[0].mxu0
    %v295 = vadd.f32 0.0, %v294
    %v296 = vpop.f32.mrb[0].mxu0
    %297 = vmatprep.mubr.f32.mxu0 0.0
    %298 = vmatmul.mubr.f32.gmra.mrb[0].mxu0 %v226
    %v299 = vpop.f32.mrb[0].mxu0
    %v300 = vadd.f32 0.0, %v299
    %v301 = vpop.f32.mrb[0].mxu0
    %302 = vdwg.mxu0
    %v303 = vld [vmem:[#allocation6] sm:$0xff]
    %v304 = vld [vmem:[#allocation6 + $0x8] sm:$0xff]
    %v305 = vld [vmem:[#allocation6 + $0x10] sm:$0xff]
    %v306 = vld [vmem:[#allocation6 + $0x18] sm:$0xff]
    %v308 = vsel %vm221, %v207, 0
    %v311 = vsel %vm221, %v212, 0
    %313 = vmatprep.subr.mxu0 0.0
    %314 = vmatpush1.msra.mxu0 %v303
    %315 = vmatprep.subr.mxu0 0.0
    %316 = vmatpush1.msra.mxu0 %v304
    %317 = vmatprep.subr.mxu0 0.0
    %318 = vmatpush1.msra.mxu0 %v305
    %319 = vmatprep.subr.mxu0 0.0
    %320 = vmatpush1.msra.mxu0 %v306
    %321 = vmatprep.subr.mxu0 0.0
    %322 = vmatpush1.msra.mxu0 0.0
    %323 = vmatprep.subr.mxu0 0.0
    %324 = vmatpush1.msra.mxu0 0.0
    %325 = vmatprep.subr.mxu0 0.0
    %326 = vmatpush1.msra.mxu0 0.0
    %327 = vmatprep.subr.mxu0 0.0
    %328 = vmatpush1.msra.mxu0 0.0
    %329 = vmatprep.subr.mxu0 0.0
    %330 = vmatpush1.msra.mxu0 0.0
    %331 = vmatprep.subr.mxu0 0.0
    %332 = vmatpush1.msra.mxu0 0.0
    %333 = vmatprep.subr.mxu0 0.0
    %334 = vmatpush1.msra.mxu0 0.0
    %335 = vmatprep.subr.mxu0 0.0
    %336 = vmatpush1.msra.mxu0 0.0
    %337 = vmatprep.subr.mxu0 0.0
    %338 = vmatpush1.msra.mxu0 0.0
    %339 = vmatprep.subr.mxu0 0.0
    %340 = vmatpush1.msra.mxu0 0.0
    %341 = vmatprep.subr.mxu0 0.0
    %342 = vmatpush1.msra.mxu0 0.0
    %343 = vmatprep.subr.mxu0 0.0
    %344 = vmatpush1.msra.mxu0 0.0
    %345 = vmatprep.subr.mxu0 0.0
    %346 = vmatpush1.msra.mxu0 0.0
    %347 = vmatprep.subr.mxu0 0.0
    %348 = vmatpush1.msra.mxu0 0.0
    %349 = vmatprep.subr.mxu0 0.0
    %350 = vmatpush1.msra.mxu0 0.0
    %351 = vmatprep.subr.mxu0 0.0
    %352 = vmatpush1.msra.mxu0 0.0
    %353 = vmatprep.subr.mxu0 0.0
    %354 = vmatpush1.msra.mxu0 0.0
    %355 = vmatprep.subr.mxu0 0.0
    %356 = vmatpush1.msra.mxu0 0.0
    %357 = vmatprep.subr.mxu0 0.0
    %358 = vmatpush1.msra.mxu0 0.0
    %359 = vmatprep.subr.mxu0 0.0
    %360 = vmatpush1.msra.mxu0 0.0
    %361 = vmatprep.subr.mxu0 0.0
    %362 = vmatpush1.msra.mxu0 0.0
    %363 = vmatprep.subr.mxu0 0.0
    %364 = vmatpush1.msra.mxu0 0.0
    %365 = vmatprep.subr.mxu0 0.0
    %366 = vmatpush1.msra.mxu0 0.0
    %367 = vmatprep.subr.mxu0 0.0
    %368 = vmatpush1.msra.mxu0 0.0
    %369 = vmatprep.subr.mxu0 0.0
    %370 = vmatpush1.msra.mxu0 0.0
    %371 = vmatprep.subr.mxu0 0.0
    %372 = vmatpush1.msra.mxu0 0.0
    %373 = vmatprep.subr.mxu0 0.0
    %374 = vmatpush1.msra.mxu0 0.0
    %375 = vmatprep.subr.mxu0 0.0
    %376 = vmatpush1.msra.mxu0 0.0
    %377 = vmatprep.mubr.f32.mxu0 0.0
    %378 = vmatmul.mubr.f32.gmra.mrb[0].mxu0 %v308
    %v379 = vpop.f32.mrb[0].mxu0
    %v380 = vadd.f32 0.0, %v379
    %v381 = vpop.f32.mrb[0].mxu0
    %382 = vmatprep.mubr.f32.mxu0 0.0
    %383 = vmatmul.mubr.f32.gmra.mrb[0].mxu0 %v311
    %v384 = vpop.f32.mrb[0].mxu0
    %v385 = vadd.f32 0.0, %v384
    %v386 = vpop.f32.mrb[0].mxu0
    %387 = vdwg.mxu0
    %v388 = vadd.f32 %v295, %v196
    %v389 = vadd.f32 %v388, %v380
    %v390 = vadd.f32 %v300, %v199
    %v391 = vadd.f32 %v390, %v385
    %v392 = vxor.u32 %v391, 2147483648
    %v393 = vmul.f32 %v392, 1.442695
    %v394 = vpow.pop %v393
    %v395 = vadd.f32 %v394, 1.0
    %v396 = vrcp.pop %v395
    %v397 = vmul.f32 1.0, %v396
    %v398 = vmul.f32 %v389, %v397
    %v399 = vadd.f32 %v398, %v204
    %v400 = vmul.f32 %v399, 0.5
    %v401 = vmul.f32 %v399, 0.70710677
    %v402 = verf.f32.pop %v401
    %v403 = vadd.f32 %v402, 1.0
    %v404 = vmul.f32 %v400, %v403
    %v405 = vpack.c.bf16 %v404, %v404
    %v406 = vld [vmem:[%s5] sm:$0xf]
    %v407 = vld [vmem:[%s5 + $0x4] sm:$0xf]
    %v408 = vld [vmem:[%s5 + $0x8] sm:$0xf]
    %v409 = vld [vmem:[%s5 + $0xc] sm:$0xf]
    %v410 = vld [vmem:[%s6] sm:$0x1]
    %v412 = vlaneseq
    %v413 = vshrl.u32 %v412, 7
    %v414 = vsub.s32 0, %v413
    %v415 = vrot.slane %v410, %v414
    %v421 = vunpack.c.l.b16 %v406
    %v422 = vunpack.c.l.b16 %v407
    %v423 = vunpack.c.l.b16 %v408
    %v424 = vunpack.c.l.b16 %v409
    %v425 = vpack.c.b16 %v422, %v421
    %v426 = vpack.c.b16 %v424, %v423
    %v430 = vsel %vm221, %v405, 0
    %432 = vmatprep.subr.bf16.mxu0 0
    %433 = vmatpush1.bf16.msra.mxu0 %v425
    %434 = vmatprep.subr.bf16.mxu0 0
    %435 = vmatpush1.bf16.msra.mxu0 %v426
    %436 = vmatprep.subr.bf16.mxu0 0
    %437 = vmatpush1.bf16.msra.mxu0 0
    %438 = vmatprep.subr.bf16.mxu0 0
    %439 = vmatpush1.bf16.msra.mxu0 0
    %440 = vmatprep.subr.bf16.mxu0 0
    %441 = vmatpush1.bf16.msra.mxu0 0
    %442 = vmatprep.subr.bf16.mxu0 0
    %443 = vmatpush1.bf16.msra.mxu0 0
    %444 = vmatprep.subr.bf16.mxu0 0
    %445 = vmatpush1.bf16.msra.mxu0 0
    %446 = vmatprep.subr.bf16.mxu0 0
    %447 = vmatpush1.bf16.msra.mxu0 0
    %448 = vmatprep.subr.bf16.mxu0 0
    %449 = vmatpush1.bf16.msra.mxu0 0
    %450 = vmatprep.subr.bf16.mxu0 0
    %451 = vmatpush1.bf16.msra.mxu0 0
    %452 = vmatprep.subr.bf16.mxu0 0
    %453 = vmatpush1.bf16.msra.mxu0 0
    %454 = vmatprep.subr.bf16.mxu0 0
    %455 = vmatpush1.bf16.msra.mxu0 0
    %456 = vmatprep.subr.bf16.mxu0 0
    %457 = vmatpush1.bf16.msra.mxu0 0
    %458 = vmatprep.subr.bf16.mxu0 0
    %459 = vmatpush1.bf16.msra.mxu0 0
    %460 = vmatprep.subr.bf16.mxu0 0
    %461 = vmatpush1.bf16.msra.mxu0 0
    %462 = vmatprep.subr.bf16.mxu0 0
    %463 = vmatpush1.bf16.msra.mxu0 0
    %464 = vmatprep.mubr.bf16.mxu0 0
    %465 = vmatmul.mubr.bf16.gmra.mrb[0].mxu0 %v430
    %v466 = vpop.f32.mrb[0].mxu0
    %v467 = vadd.f32 %v415, %v466
    %v468 = vpop.f32.mrb[0].mxu0
    %v469 = vpop.f32.mrb[0].mxu0
    %v470 = vpop.f32.mrb[0].mxu0
    %471 = vdwg.mxu0
    %vm472 = vcmask 392192
    %473 = vst.msk [vmem:[%s7] sm:$0xff] %vm472, %v467
    // Predicated region
    $region42: #{_lambda_.1} parent=1 // pred_check
      _
    $region43: #{_lambda_.1} parent=1 // pred_check_branch
      %475 = sbr.rel (0) target = $region45
    $region44: #{_lambda_.1} parent=1 // pred_region
      _
    $region45: #{_lambda_.1} parent=1 // pred_fallthru
      _
    // Predicated region
    $region46: #{_lambda_.1} parent=1 // pred_check
      _
    $region47: #{_lambda_.1} parent=1 // pred_check_branch
      %477 = sbr.rel (0) target = $region49
    $region48: #{_lambda_.1} parent=1 // pred_region
      _
    $region49: #{_lambda_.1} parent=1 // pred_fallthru
      _
    %478 = vsyncpa [#allocation3], 1
    %479 = vsyncpa [#allocation5], 1

</llo_original>
